<compile_context>
chip_gen: v7x
topology: tpu7x:2x2x1
jax: 0.10.0
libtpu: 0.0.40
codegen_flags: <defaults>
</compile_context>

<pallas_src>
import functools

import jax
import jax.numpy as jnp
from jax.experimental import pallas as pl
from jax.experimental.pallas import tpu as pltpu


# ---- packed-parameter slab layout inside a (32, 128) f32 array --------------
#   W1_aug  : rows  0:8 , cols 0:8   rows 0:5 = [W1 (5,7) | b1], row 7 col 7 = 1
#   W2_aug  : rows  8:24, cols 0:8   rows 0:8 = [W2 (8,5) | 0 0 | b2], row 8 col 7 = 1
#   W34_aug : rows 24:32, cols 0:16  rows 0:4 = [W4@W3 (4,8) | W4@b3+b4 | 0...]
# Everything else is zero (and those zeros are load-bearing: they keep the
# pass-through / padding rows of the activations zero).
_SLAB_SHAPE = (32, 128)
_MAX_TILE_B = 32768          # 1 MiB per f32 (8, TILE_B) tile


def _round_up(n, m):
    return (n + m - 1) // m * m


def _mlp_kernel(xT_ref, p_ref, oT_ref):
    # xT: batch on LANES. rows 0:7 = features (transposed), row 7 = 1.0 (bias carrier)
    xT = xT_ref[...]                                   # (8, TILE_B)

    # 8-sublane-aligned, lane-0-based views of the grid-invariant param slab.
    w1 = p_ref[0:8, 0:8]                               # (8, 8)  augmented layer 1
    w2 = p_ref[8:24, 0:8]                              # (16, 8) augmented layer 2
    w34 = p_ref[24:32, 0:16]                           # (8, 16) fused layers 3+4

    # seq[0]+seq[1]: Linear(7,5)+ReLU  (bias folded via the ones row; relu(1)=1 keeps it)
    h = jnp.maximum(jnp.dot(w1, xT, preferred_element_type=jnp.float32), 0.0)   # (8, TILE_B)
    # seq[2]+seq[3]: Linear(5,8)+ReLU  (augmented weights re-emit the ones row at row 8)
    h = jnp.maximum(jnp.dot(w2, h, preferred_element_type=jnp.float32), 0.0)    # (16, TILE_B)
    # seq[4] + self.linear fused: Linear(8,6) then Linear(6,4), no activation.
    # Rows 0:4 of the result are the module output, rows 4:8 are zero padding.
    oT_ref[...] = jnp.dot(w34, h, preferred_element_type=jnp.float32).astype(oT_ref.dtype)


def pack_params(params):
    """Fuse the trailing bias-only layers and pack augmented weights into one slab.

    Weights follow the torch convention: W is (out, in), b is (out,).
    """
    w1, b1 = params["w1"], params["b1"]                # (5, 7), (5,)
    w2, b2 = params["w2"], params["b2"]                # (8, 5), (8,)
    w3, b3 = params["w3"], params["b3"]                # (6, 8), (6,)
    w4, b4 = params["w4"], params["b4"]                # (4, 6), (4,)

    w34 = w4 @ w3                                      # (4, 8)
    b34 = w4 @ b3 + b4                                 # (4,)

    p = jnp.zeros(_SLAB_SHAPE, jnp.float32)
    # W1_aug
    p = p.at[0:5, 0:7].set(w1)
    p = p.at[0:5, 7].set(b1)
    p = p.at[7, 7].set(1.0)                            # ones-row passthrough
    # W2_aug
    p = p.at[8:16, 0:5].set(w2)
    p = p.at[8:16, 7].set(b2)
    p = p.at[16, 7].set(1.0)                           # ones-row passthrough
    # W34_aug (fused)
    p = p.at[24:28, 0:8].set(w34)
    p = p.at[24:28, 8].set(b34)
    return p


@functools.partial(jax.jit, static_argnames=("tile_b",))
def multiple_linear_b(x, packed, tile_b=None):
    """x: (B, 7) float32.  packed: (32, 128) float32 slab from pack_params()."""
    B = x.shape[0]
    if tile_b is None:
        b128 = _round_up(B, 128)
        if b128 <= 2048:
            # One grid step; tiny batches are dispatch-overhead bound anyway.
            tile_b = b128
        else:
            # >= 2 grid steps so the "parallel" axis can feed both v7x
            # TensorCores; cap at 32K lanes (1 MiB/tile, ~4 MiB double-buffered
            # in+out -> fits v5e 16 MiB scoped and v7x 32 MiB scoped VMEM).
            tile_b = min(_round_up(-(-b128 // 2), 128), _MAX_TILE_B)
    bp = _round_up(B, tile_b)

    # Lane-dense layout: batch -> lanes.  Row 7 carries the constant 1 that
    # folds the biases into the matmuls.  Padded batch columns are all-zero
    # (including the ones row) so they produce zeros and are sliced off below.
    xT = jnp.concatenate([x.T, jnp.ones((1, B), x.dtype)], axis=0)   # (8, B)
    if bp != B:
        xT = jnp.pad(xT, ((0, 0), (0, bp - B)))

    outT = pl.pallas_call(
        _mlp_kernel,
        out_shape=jax.ShapeDtypeStruct((8, bp), jnp.float32),
        grid_spec=pltpu.PrefetchScalarGridSpec(
            num_scalar_prefetch=0,
            grid=(bp // tile_b,),
            in_specs=[
                pl.BlockSpec((8, tile_b), lambda i: (0, i)),      # batch tile (lane-dense)
                pl.BlockSpec(_SLAB_SHAPE, lambda i: (0, 0)),      # resident params
            ],
            out_specs=pl.BlockSpec((8, tile_b), lambda i: (0, i)),
        ),
        compiler_params=pltpu.CompilerParams(
            dimension_semantics=("parallel",),
            vmem_limit_bytes=32 * 1024 * 1024,
        ),
    )(xT, packed)

    # Rows 0:4 are the real output; transpose back to (B, 4) for the caller.
    return outT[0:4, :B].T


def _init_linear(key, fan_in, fan_out):
    """Deterministic init mimicking torch.nn.Linear default (uniform +-1/sqrt(fan_in))."""
    kw, kb = jax.random.split(key)
    bound = 1.0 / jnp.sqrt(float(fan_in))
    w = jax.random.uniform(kw, (fan_out, fan_in), jnp.float32, -bound, bound)  # (out, in)
    b = jax.random.uniform(kb, (fan_out,), jnp.float32, -bound, bound)
    return w, b


def _reference(x, p):
    h = jnp.maximum(x @ p["w1"].T + p["b1"], 0.0)
    h = jnp.maximum(h @ p["w2"].T + p["b2"], 0.0)
    h = h @ p["w3"].T + p["b3"]
    return h @ p["w4"].T + p["b4"]


if __name__ == "__main__":
    key = jax.random.PRNGKey(0)
    kx, kx2, k1, k2, k3, k4 = jax.random.split(key, 6)

    w1, b1 = _init_linear(k1, 7, 5)
    w2, b2 = _init_linear(k2, 5, 8)
    w3, b3 = _init_linear(k3, 8, 6)
    w4, b4 = _init_linear(k4, 6, 4)
    params = dict(w1=w1, b1=b1, w2=w2, b2=b2, w3=w3, b3=b3, w4=w4, b4=b4)

    # Pack (layer-fuse + bias-fold) parameters once; reuse for every forward call.
    packed = jax.block_until_ready(pack_params(params))

    ok = True
    for batch, kk in ((8, kx), (333, kx2)):          # small batch + ragged batch (pad path)
        x = jax.random.normal(kk, (batch, 7), jnp.float32)
        out = jax.block_until_ready(multiple_linear_b(x, packed))
        ref = _reference(x, params)
        assert out.shape == (batch, 4), out.shape
        ok &= bool(jnp.allclose(out, ref, atol=1e-5, rtol=1e-5))

    assert ok, "mismatch vs reference"
    print("KERNEL_OK")
</pallas_src>

<mosaic_0001>
module attributes {stable_mosaic.version = 11 : i64} {
  func.func @_mlp_kernel(%arg0: i32, %arg1: memref<8x128xf32, #tpu.memory_space<vmem>>, %arg2: memref<32x128xf32, #tpu.memory_space<vmem>>, %arg3: memref<8x128xf32, #tpu.memory_space<vmem>>) attributes {dimension_semantics = [#tpu.dimension_semantics<parallel>], iteration_bounds = array<i64: 1>, scalar_prefetch = 0 : i64, scratch_operands = 0 : i64, tpu.core_type = #tpu.core_type<tc>, window_params = [{transform_indices = @transform_0, window_bounds = array<i64: 8, 128>}, {pipeline_mode = #tpu.pipeline_mode<synchronous>, transform_indices = @transform_1, window_bounds = array<i64: 32, 128>}, {transform_indices = @transform_2, window_bounds = array<i64: 8, 128>}]} {
    %c0 = arith.constant 0 : index
    %c0_0 = arith.constant 0 : index
    %0 = vector.load %arg1[%c0, %c0_0] : memref<8x128xf32, #tpu.memory_space<vmem>>, vector<8x128xf32>
    %c0_1 = arith.constant 0 : index
    %c0_2 = arith.constant 0 : index
    %1 = vector.load %arg2[%c0_1, %c0_2] : memref<32x128xf32, #tpu.memory_space<vmem>>, vector<8x8xf32>
    %c8 = arith.constant 8 : index
    %c0_3 = arith.constant 0 : index
    %2 = vector.load %arg2[%c8, %c0_3] : memref<32x128xf32, #tpu.memory_space<vmem>>, vector<16x8xf32>
    %c24 = arith.constant 24 : index
    %c0_4 = arith.constant 0 : index
    %3 = vector.load %arg2[%c24, %c0_4] : memref<32x128xf32, #tpu.memory_space<vmem>>, vector<8x16xf32>
    %cst = arith.constant dense<0.000000e+00> : vector<8x128xf32>
    %4 = tpu.matmul %1, %0, %cst {dimension_numbers = #tpu.dot_dimension_numbers<[1], [0], [0], [1], [0, 0, 1, 1], [], []>} : vector<8x8xf32>, vector<8x128xf32>, vector<8x128xf32> -> vector<8x128xf32>
    %cst_5 = arith.constant 0.000000e+00 : f32
    %5 = vector.broadcast %cst_5 : f32 to vector<8x128xf32>
    %6 = arith.maximumf %4, %5 : vector<8x128xf32>
    %cst_6 = arith.constant dense<0.000000e+00> : vector<16x128xf32>
    %7 = tpu.matmul %2, %6, %cst_6 {dimension_numbers = #tpu.dot_dimension_numbers<[1], [0], [0], [1], [0, 0, 1, 1], [], []>} : vector<16x8xf32>, vector<8x128xf32>, vector<16x128xf32> -> vector<16x128xf32>
    %cst_7 = arith.constant 0.000000e+00 : f32
    %8 = vector.broadcast %cst_7 : f32 to vector<16x128xf32>
    %9 = arith.maximumf %7, %8 : vector<16x128xf32>
    %cst_8 = arith.constant dense<0.000000e+00> : vector<8x128xf32>
    %10 = tpu.matmul %3, %9, %cst_8 {dimension_numbers = #tpu.dot_dimension_numbers<[1], [0], [0], [1], [0, 0, 1, 1], [], []>} : vector<8x16xf32>, vector<16x128xf32>, vector<8x128xf32> -> vector<8x128xf32>
    %c0_9 = arith.constant 0 : index
    %c0_10 = arith.constant 0 : index
    %11 = vector.load %arg3[%c0_9, %c0_10] : memref<8x128xf32, #tpu.memory_space<vmem>>, vector<8x128xf32>
    tpu.vector_store %arg3[%c0_9, %c0_10], %10 {strides = array<i32>} : memref<8x128xf32, #tpu.memory_space<vmem>>, vector<8x128xf32>,
    return
  }
  func.func @transform_0(%arg0: i32) -> (i32, i32) {
    %c0_i32 = arith.constant 0 : i32
    %c0_i32_0 = arith.constant 0 : i32
    return %c0_i32, %arg0 : i32, i32
  }
  func.func @transform_1(%arg0: i32) -> (i32, i32) {
    %c0_i32 = arith.constant 0 : i32
    %c0_i32_0 = arith.constant 0 : i32
    %c0_i32_1 = arith.constant 0 : i32
    return %c0_i32, %c0_i32_0 : i32, i32
  }
  func.func @transform_2(%arg0: i32) -> (i32, i32) {
    %c0_i32 = arith.constant 0 : i32
    %c0_i32_0 = arith.constant 0 : i32
    return %c0_i32, %arg0 : i32, i32
  }
}

</mosaic_0001>

<llo_original>
// kernel: multiple_linear_b.1
$region0: #{multiple_linear_b.1}
  #allocation0 [shape = 'u32[]', space=smem, size = 0x4, offset = 0x4, fixed_abs, tag = 'smem constant byte address 0x4 - core index']
  #allocation1 [shape = 'u32[144,128]{1,0:T(1,128)}', space=vmem, size = 0x12000, scoped, tag = 'internal scratch']
  %s0 = inlined_call_operand.vmem [shape: f32[8,128], index: 0, kind: input, shape index: {}]
  %s1 = inlined_call_operand.vmem [shape: f32[32,128], index: 1, kind: input, shape index: {}]
  %s2 = inlined_call_operand.vmem [shape: f32[8,128], index: 2, kind: output, shape index: {}]
  %s3 = sld [smem:[#allocation0]]
  $region18: #{multiple_linear_b.1} parent=0
    _
  %s5 = ssub.s32 1, %s3
  %s6 = scalar_select 0, %s5, %s3
  // Predicated region
  $region2: #{multiple_linear_b.1} parent=0 // pred_check
    _
  $region3: #{multiple_linear_b.1} parent=0 // pred_check_branch
    %8 = sbr.rel (0) target = $region5
  $region4: #{multiple_linear_b.1} parent=0 // pred_region
    _
  $region5: #{multiple_linear_b.1} parent=0 // pred_fallthru
    _
  // Predicated region
  $region6: #{multiple_linear_b.1} parent=0 // pred_check
    _
  $region7: #{multiple_linear_b.1} parent=0 // pred_check_branch
    %10 = sbr.rel (0) target = $region9
  $region8: #{multiple_linear_b.1} parent=0 // pred_region
    _
  $region9: #{multiple_linear_b.1} parent=0 // pred_fallthru
    _
  %v11 = vld [vmem:[%s0] sm:$0xff]
  %v12 = vld [vmem:[%s1] sm:$0xff]
  %v13 = vld [vmem:[%s1 + $0x8] sm:$0xff]
  %v14 = vld [vmem:[%s1 + $0x10] sm:$0xff]
  %v15 = vld [vmem:[%s1 + $0x18] sm:$0xff]
  %vm16 = vcmask 64512
  %v18 = vsel %vm16, %v12, 0
  %20 = vmatprep.subr.mxu0 0.0
  %21 = vmatpush1.msra.mxu0 %v11
  %22 = vmatprep.subr.mxu0 0.0
  %23 = vmatpush1.msra.mxu0 0.0
  %24 = vmatprep.subr.mxu0 0.0
  %25 = vmatpush1.msra.mxu0 0.0
  %26 = vmatprep.subr.mxu0 0.0
  %27 = vmatpush1.msra.mxu0 0.0
  %28 = vmatprep.subr.mxu0 0.0
  %29 = vmatpush1.msra.mxu0 0.0
  %30 = vmatprep.subr.mxu0 0.0
  %31 = vmatpush1.msra.mxu0 0.0
  %32 = vmatprep.subr.mxu0 0.0
  %33 = vmatpush1.msra.mxu0 0.0
  %34 = vmatprep.subr.mxu0 0.0
  %35 = vmatpush1.msra.mxu0 0.0
  %36 = vmatprep.subr.mxu0 0.0
  %37 = vmatpush1.msra.mxu0 0.0
  %38 = vmatprep.subr.mxu0 0.0
  %39 = vmatpush1.msra.mxu0 0.0
  %40 = vmatprep.subr.mxu0 0.0
  %41 = vmatpush1.msra.mxu0 0.0
  %42 = vmatprep.subr.mxu0 0.0
  %43 = vmatpush1.msra.mxu0 0.0
  %44 = vmatprep.subr.mxu0 0.0
  %45 = vmatpush1.msra.mxu0 0.0
  %46 = vmatprep.subr.mxu0 0.0
  %47 = vmatpush1.msra.mxu0 0.0
  %48 = vmatprep.subr.mxu0 0.0
  %49 = vmatpush1.msra.mxu0 0.0
  %50 = vmatprep.subr.mxu0 0.0
  %51 = vmatpush1.msra.mxu0 0.0
  %52 = vmatprep.subr.mxu0 0.0
  %53 = vmatpush1.msra.mxu0 0.0
  %54 = vmatprep.subr.mxu0 0.0
  %55 = vmatpush1.msra.mxu0 0.0
  %56 = vmatprep.subr.mxu0 0.0
  %57 = vmatpush1.msra.mxu0 0.0
  %58 = vmatprep.subr.mxu0 0.0
  %59 = vmatpush1.msra.mxu0 0.0
  %60 = vmatprep.subr.mxu0 0.0
  %61 = vmatpush1.msra.mxu0 0.0
  %62 = vmatprep.subr.mxu0 0.0
  %63 = vmatpush1.msra.mxu0 0.0
  %64 = vmatprep.subr.mxu0 0.0
  %65 = vmatpush1.msra.mxu0 0.0
  %66 = vmatprep.subr.mxu0 0.0
  %67 = vmatpush1.msra.mxu0 0.0
  %68 = vmatprep.subr.mxu0 0.0
  %69 = vmatpush1.msra.mxu0 0.0
  %70 = vmatprep.subr.mxu0 0.0
  %71 = vmatpush1.msra.mxu0 0.0
  %72 = vmatprep.subr.mxu0 0.0
  %73 = vmatpush1.msra.mxu0 0.0
  %74 = vmatprep.subr.mxu0 0.0
  %75 = vmatpush1.msra.mxu0 0.0
  %76 = vmatprep.subr.mxu0 0.0
  %77 = vmatpush1.msra.mxu0 0.0
  %78 = vmatprep.subr.mxu0 0.0
  %79 = vmatpush1.msra.mxu0 0.0
  %80 = vmatprep.subr.mxu0 0.0
  %81 = vmatpush1.msra.mxu0 0.0
  %82 = vmatprep.subr.mxu0 0.0
  %83 = vmatpush1.msra.mxu0 0.0
  %84 = vmatprep.mubr.f32.mxu0 0.0
  %85 = vmatmul.mubr.f32.gmra.mrb[0].mxu0 %v18
  %v86 = vpop.f32.mrb[0].mxu0
  %v87 = vadd.f32 0.0, %v86
  %v88 = vpop.f32.mrb[0].mxu0
  %89 = vdwg.mxu0
  %v90 = vmax.f32 %v87, 0.0
  %v92 = vsel %vm16, %v13, 0
  %v95 = vsel %vm16, %v14, 0
  %97 = vmatprep.subr.mxu0 0.0
  %98 = vmatpush1.msra.mxu0 %v90
  %99 = vmatprep.subr.mxu0 0.0
  %100 = vmatpush1.msra.mxu0 0.0
  %101 = vmatprep.subr.mxu0 0.0
  %102 = vmatpush1.msra.mxu0 0.0
  %103 = vmatprep.subr.mxu0 0.0
  %104 = vmatpush1.msra.mxu0 0.0
  %105 = vmatprep.subr.mxu0 0.0
  %106 = vmatpush1.msra.mxu0 0.0
  %107 = vmatprep.subr.mxu0 0.0
  %108 = vmatpush1.msra.mxu0 0.0
  %109 = vmatprep.subr.mxu0 0.0
  %110 = vmatpush1.msra.mxu0 0.0
  %111 = vmatprep.subr.mxu0 0.0
  %112 = vmatpush1.msra.mxu0 0.0
  %113 = vmatprep.subr.mxu0 0.0
  %114 = vmatpush1.msra.mxu0 0.0
  %115 = vmatprep.subr.mxu0 0.0
  %116 = vmatpush1.msra.mxu0 0.0
  %117 = vmatprep.subr.mxu0 0.0
  %118 = vmatpush1.msra.mxu0 0.0
  %119 = vmatprep.subr.mxu0 0.0
  %120 = vmatpush1.msra.mxu0 0.0
  %121 = vmatprep.subr.mxu0 0.0
  %122 = vmatpush1.msra.mxu0 0.0
  %123 = vmatprep.subr.mxu0 0.0
  %124 = vmatpush1.msra.mxu0 0.0
  %125 = vmatprep.subr.mxu0 0.0
  %126 = vmatpush1.msra.mxu0 0.0
  %127 = vmatprep.subr.mxu0 0.0
  %128 = vmatpush1.msra.mxu0 0.0
  %129 = vmatprep.subr.mxu0 0.0
  %130 = vmatpush1.msra.mxu0 0.0
  %131 = vmatprep.subr.mxu0 0.0
  %132 = vmatpush1.msra.mxu0 0.0
  %133 = vmatprep.subr.mxu0 0.0
  %134 = vmatpush1.msra.mxu0 0.0
  %135 = vmatprep.subr.mxu0 0.0
  %136 = vmatpush1.msra.mxu0 0.0
  %137 = vmatprep.subr.mxu0 0.0
  %138 = vmatpush1.msra.mxu0 0.0
  %139 = vmatprep.subr.mxu0 0.0
  %140 = vmatpush1.msra.mxu0 0.0
  %141 = vmatprep.subr.mxu0 0.0
  %142 = vmatpush1.msra.mxu0 0.0
  %143 = vmatprep.subr.mxu0 0.0
  %144 = vmatpush1.msra.mxu0 0.0
  %145 = vmatprep.subr.mxu0 0.0
  %146 = vmatpush1.msra.mxu0 0.0
  %147 = vmatprep.subr.mxu0 0.0
  %148 = vmatpush1.msra.mxu0 0.0
  %149 = vmatprep.subr.mxu0 0.0
  %150 = vmatpush1.msra.mxu0 0.0
  %151 = vmatprep.subr.mxu0 0.0
  %152 = vmatpush1.msra.mxu0 0.0
  %153 = vmatprep.subr.mxu0 0.0
  %154 = vmatpush1.msra.mxu0 0.0
  %155 = vmatprep.subr.mxu0 0.0
  %156 = vmatpush1.msra.mxu0 0.0
  %157 = vmatprep.subr.mxu0 0.0
  %158 = vmatpush1.msra.mxu0 0.0
  %159 = vmatprep.subr.mxu0 0.0
  %160 = vmatpush1.msra.mxu0 0.0
  %161 = vmatprep.mubr.f32.mxu0 0.0
  %162 = vmatmul.mubr.f32.gmra.mrb[0].mxu0 %v92
  %v163 = vpop.f32.mrb[0].mxu0
  %v164 = vadd.f32 0.0, %v163
  %v165 = vpop.f32.mrb[0].mxu0
  %166 = vmatprep.mubr.f32.mxu0 0.0
  %167 = vmatmul.mubr.f32.gmra.mrb[0].mxu0 %v95
  %v168 = vpop.f32.mrb[0].mxu0
  %v169 = vadd.f32 0.0, %v168
  %v170 = vpop.f32.mrb[0].mxu0
  %171 = vdwg.mxu0
  %v172 = vmax.f32 %v164, 0.0
  %v173 = vmax.f32 %v169, 0.0
  %vm174 = vcmask 130048
  %v176 = vsel %vm174, %v15, 0
  %178 = vmatprep.subr.mxu0 0.0
  %179 = vmatpush1.msra.mxu0 %v172
  %180 = vmatprep.subr.mxu0 0.0
  %181 = vmatpush1.msra.mxu0 %v173
  %182 = vmatprep.subr.mxu0 0.0
  %183 = vmatpush1.msra.mxu0 0.0
  %184 = vmatprep.subr.mxu0 0.0
  %185 = vmatpush1.msra.mxu0 0.0
  %186 = vmatprep.subr.mxu0 0.0
  %187 = vmatpush1.msra.mxu0 0.0
  %188 = vmatprep.subr.mxu0 0.0
  %189 = vmatpush1.msra.mxu0 0.0
  %190 = vmatprep.subr.mxu0 0.0
  %191 = vmatpush1.msra.mxu0 0.0
  %192 = vmatprep.subr.mxu0 0.0
  %193 = vmatpush1.msra.mxu0 0.0
  %194 = vmatprep.subr.mxu0 0.0
  %195 = vmatpush1.msra.mxu0 0.0
  %196 = vmatprep.subr.mxu0 0.0
  %197 = vmatpush1.msra.mxu0 0.0
  %198 = vmatprep.subr.mxu0 0.0
  %199 = vmatpush1.msra.mxu0 0.0
  %200 = vmatprep.subr.mxu0 0.0
  %201 = vmatpush1.msra.mxu0 0.0
  %202 = vmatprep.subr.mxu0 0.0
  %203 = vmatpush1.msra.mxu0 0.0
  %204 = vmatprep.subr.mxu0 0.0
  %205 = vmatpush1.msra.mxu0 0.0
  %206 = vmatprep.subr.mxu0 0.0
  %207 = vmatpush1.msra.mxu0 0.0
  %208 = vmatprep.subr.mxu0 0.0
  %209 = vmatpush1.msra.mxu0 0.0
  %210 = vmatprep.subr.mxu0 0.0
  %211 = vmatpush1.msra.mxu0 0.0
  %212 = vmatprep.subr.mxu0 0.0
  %213 = vmatpush1.msra.mxu0 0.0
  %214 = vmatprep.subr.mxu0 0.0
  %215 = vmatpush1.msra.mxu0 0.0
  %216 = vmatprep.subr.mxu0 0.0
  %217 = vmatpush1.msra.mxu0 0.0
  %218 = vmatprep.subr.mxu0 0.0
  %219 = vmatpush1.msra.mxu0 0.0
  %220 = vmatprep.subr.mxu0 0.0
  %221 = vmatpush1.msra.mxu0 0.0
  %222 = vmatprep.subr.mxu0 0.0
  %223 = vmatpush1.msra.mxu0 0.0
  %224 = vmatprep.subr.mxu0 0.0
  %225 = vmatpush1.msra.mxu0 0.0
  %226 = vmatprep.subr.mxu0 0.0
  %227 = vmatpush1.msra.mxu0 0.0
  %228 = vmatprep.subr.mxu0 0.0
  %229 = vmatpush1.msra.mxu0 0.0
  %230 = vmatprep.subr.mxu0 0.0
  %231 = vmatpush1.msra.mxu0 0.0
  %232 = vmatprep.subr.mxu0 0.0
  %233 = vmatpush1.msra.mxu0 0.0
  %234 = vmatprep.subr.mxu0 0.0
  %235 = vmatpush1.msra.mxu0 0.0
  %236 = vmatprep.subr.mxu0 0.0
  %237 = vmatpush1.msra.mxu0 0.0
  %238 = vmatprep.subr.mxu0 0.0
  %239 = vmatpush1.msra.mxu0 0.0
  %240 = vmatprep.subr.mxu0 0.0
  %241 = vmatpush1.msra.mxu0 0.0
  %242 = vmatprep.mubr.f32.mxu0 0.0
  %243 = vmatmul.mubr.f32.gmra.mrb[0].mxu0 %v176
  %v244 = vpop.f32.mrb[0].mxu0
  %v245 = vadd.f32 0.0, %v244
  %v246 = vpop.f32.mrb[0].mxu0
  %247 = vdwg.mxu0
  %248 = vst [vmem:[%s2] sm:$0xff] %v245
  // Predicated region
  $region10: #{multiple_linear_b.1} parent=0 // pred_check
    _
  $region11: #{multiple_linear_b.1} parent=0 // pred_check_branch
    %250 = sbr.rel (0) target = $region13
  $region12: #{multiple_linear_b.1} parent=0 // pred_region
    _
  $region13: #{multiple_linear_b.1} parent=0 // pred_fallthru
    _
  // Predicated region
  $region14: #{multiple_linear_b.1} parent=0 // pred_check
    _
  $region15: #{multiple_linear_b.1} parent=0 // pred_check_branch
    %252 = sbr.rel (0) target = $region17
  $region16: #{multiple_linear_b.1} parent=0 // pred_region
    _
  $region17: #{multiple_linear_b.1} parent=0 // pred_fallthru
    _

</llo_original>
